<compile_context>
chip_gen: v5e
topology: v5e:2x2
jax: 0.10.0
libtpu: 0.0.40
codegen_flags: <defaults>
</compile_context>

<pallas_src>
import functools

import jax
import jax.numpy as jnp
from jax.experimental import pallas as pl
from jax.experimental.pallas import tpu as pltpu

EPS = 1e-8
LANES = 128
CHUNK = 32       # rows per inner step; matches int8 sublane packing (32, 128)
ROW_MULT = 32    # tile_r multiple: int8 needs 32; f32 (8) / bf16 (16) divide it


def _cdiv(a, b):
    return (a + b - 1) // b


def _round_up(x, m):
    return _cdiv(x, m) * m


def _msce_kernel(pred_ref, target_ref, out_ref, *, tile_r):
    # out_ref block view: (1, 1, 4, 8, 128) f32 per-(split, batch) accumulator:
    #   [0] count(code==1)   [1] count(code==0)
    #   [2] sum(occ * log)   [3] sum(unocc * log)
    t = pl.program_id(2)

    @pl.when(t == 0)
    def _():
        out_ref[...] = jnp.zeros_like(out_ref)

    n_chunks = tile_r // CHUNK

    def fold(x):
        # (CHUNK, 128) -> (8, 128): sublane-aligned vreg adds only (no XLU).
        acc = x[0:8, :]
        for r in range(8, CHUNK, 8):
            acc = acc + x[r:r + 8, :]
        return acc

    def body(i, carry):
        occ_s, unocc_s, occ_log_s, unocc_log_s = carry
        start = pl.multiple_of(i * CHUNK, CHUNK)
        p = pred_ref[0, pl.ds(start, CHUNK), :].astype(jnp.float32)   # (32,128)
        code = target_ref[0, pl.ds(start, CHUNK), :].astype(jnp.int32)
        is_occ = code == 1
        is_unocc = code == 0
        zeros = jnp.zeros_like(p)
        ones = jnp.ones_like(p)
        # Single transcendental per element; branches are mutually exclusive.
        # Padded / "other" elements hit the unoccupied branch harmlessly: the
        # log argument stays finite and both selects below pick 0.
        logv = jnp.log(jnp.where(is_occ, p, 1.0 - p) + EPS)
        return (occ_s + fold(jnp.where(is_occ, ones, zeros)),
                unocc_s + fold(jnp.where(is_unocc, ones, zeros)),
                occ_log_s + fold(jnp.where(is_occ, logv, zeros)),
                unocc_log_s + fold(jnp.where(is_unocc, logv, zeros)))

    init = (jnp.zeros((8, LANES), jnp.float32),) * 4
    occ_s, unocc_s, occ_log_s, unocc_log_s = jax.lax.fori_loop(
        0, n_chunks, body, init, unroll=min(4, n_chunks))

    out_ref[0, 0, 0, :, :] += occ_s
    out_ref[0, 0, 1, :, :] += unocc_s
    out_ref[0, 0, 2, :, :] += occ_log_s
    out_ref[0, 0, 3, :, :] += unocc_log_s


@functools.partial(jax.jit, static_argnames=("max_tile_rows",))
def msce_loss(pred, target, max_tile_rows=4096):
    """Pallas implementation of MSCELoss.forward (mean over batch of fnce+fpce)."""
    B = pred.shape[0]
    pred_flat = pred.reshape(B, -1)
    target_flat = target.reshape(B, -1)
    assert pred_flat.shape == target_flat.shape
    F = pred_flat.shape[1]

    # pred: keep f32 or bf16 (upcast to f32 inside the kernel); others -> f32.
    if pred_flat.dtype not in (jnp.dtype(jnp.float32), jnp.dtype(jnp.bfloat16)):
        pred_flat = pred_flat.astype(jnp.float32)

    # Exact occupancy classification -> int8 code {1, 0, -1}. Semantics match
    # the reference (==1 / ==0) even for non-binary float targets.
    code = jnp.where(target_flat == 1, jnp.int8(1),
                     jnp.where(target_flat == 0, jnp.int8(0), jnp.int8(-1)))

    # Tiling: balanced tiles (row padding < ROW_MULT per tile); split the
    # reduction axis in two when possible so both v7x TensorCores get work
    # even for B == 1.
    R = _cdiv(F, LANES)
    max_rows = max(_round_up(max_tile_rows, ROW_MULT), ROW_MULT)
    n_tiles = _cdiv(_round_up(R, ROW_MULT), max_rows)
    num_splits = 2 if n_tiles >= 2 else 1
    n_tiles = _round_up(n_tiles, num_splits)
    tile_r = _round_up(_cdiv(_round_up(R, ROW_MULT), n_tiles), ROW_MULT)
    R3 = tile_r * n_tiles
    tiles_per_split = n_tiles // num_splits

    # One flat pad to the exact tile multiple; pad values are inert
    # (code=-1 matches neither mask, pred=0.5 keeps the log finite).
    total = R3 * LANES
    pred3 = jnp.pad(pred_flat, ((0, 0), (0, total - F)),
                    constant_values=0.5).reshape(B, R3, LANES)
    code3 = jnp.pad(code, ((0, 0), (0, total - F)),
                    constant_values=-1).reshape(B, R3, LANES)

    kernel = functools.partial(_msce_kernel, tile_r=tile_r)

    out = pl.pallas_call(
        kernel,
        out_shape=jax.ShapeDtypeStruct((num_splits, B, 4, 8, LANES),
                                       jnp.float32),
        grid_spec=pltpu.PrefetchScalarGridSpec(
            num_scalar_prefetch=0,
            grid=(num_splits, B, tiles_per_split),
            in_specs=[
                pl.BlockSpec((1, tile_r, LANES),
                             lambda s, b, t: (b, s * tiles_per_split + t, 0)),
                pl.BlockSpec((1, tile_r, LANES),
                             lambda s, b, t: (b, s * tiles_per_split + t, 0)),
            ],
            out_specs=pl.BlockSpec((1, 1, 4, 8, LANES),
                                   lambda s, b, t: (s, b, 0, 0, 0)),
        ),
        compiler_params=pltpu.CompilerParams(
            dimension_semantics=("parallel", "parallel", "arbitrary")),
    )(pred3, code3)

    # Tiny epilogue in JAX: cross-lane/split reductions + eps/divide/mean.
    acc = jnp.sum(out, axis=(0, 3, 4))          # (B, 4)
    P = acc[:, 0] + EPS
    N = acc[:, 1] + EPS
    fnce = -acc[:, 2] / P
    fpce = -acc[:, 3] / N
    return jnp.mean(fnce + fpce)


def _reference(pred, target):
    B = pred.shape[0]
    pred_flat = pred.reshape(B, -1).astype(jnp.float32)
    target_flat = target.reshape(B, -1).astype(jnp.float32)
    occ = (target_flat == 1.0).astype(jnp.float32)
    unocc = (target_flat == 0.0).astype(jnp.float32)
    P = occ.sum(axis=1) + EPS
    N = unocc.sum(axis=1) + EPS
    fnce = -(occ * jnp.log(pred_flat + EPS)).sum(axis=1) / P
    fpce = -(unocc * jnp.log(1.0 - pred_flat + EPS)).sum(axis=1) / N
    return jnp.mean(fnce + fpce)


if __name__ == "__main__":
    key = jax.random.PRNGKey(0)
    k1, k2 = jax.random.split(key)

    # pred: NCHW probabilities in (0,1); target: (B, H, W) binary occupancy
    # (the PyTorch module's unsqueeze is a no-op after per-batch flattening).
    B, C, H, W = 2, 1, 16, 16
    pred = jax.nn.sigmoid(jax.random.normal(k1, (B, C, H, W), dtype=jnp.float32))
    target = (jax.random.uniform(k2, (B, H, W)) > 0.5).astype(jnp.float32)

    loss = jax.block_until_ready(msce_loss(pred, target))
    ref = _reference(pred, target)
    assert jnp.allclose(loss, ref, rtol=1e-5, atol=1e-6), (loss, ref)

    print("KERNEL_OK")
</pallas_src>

<mosaic_0001>
module attributes {stable_mosaic.version = 11 : i64} {
  func.func @_msce_kernel(%arg0: i32, %arg1: i32, %arg2: i32, %arg3: memref<1x32x128xf32, #tpu.memory_space<vmem>>, %arg4: memref<1x32x128xi8, #tpu.memory_space<vmem>>, %arg5: memref<1x1x4x8x128xf32, #tpu.memory_space<vmem>>) attributes {dimension_semantics = [#tpu.dimension_semantics<parallel>, #tpu.dimension_semantics<parallel>, #tpu.dimension_semantics<arbitrary>], iteration_bounds = array<i64: 1, 2, 1>, scalar_prefetch = 0 : i64, scratch_operands = 0 : i64, tpu.core_type = #tpu.core_type<tc>, window_params = [{transform_indices = @transform_0, window_bounds = array<i64: 1, 32, 128>}, {transform_indices = @transform_1, window_bounds = array<i64: 1, 32, 128>}, {transform_indices = @transform_2, window_bounds = array<i64: 1, 1, 4, 8, 128>}]} {
    %c0_i32 = arith.constant 0 : i32
    %0 = arith.cmpi eq, %arg2, %c0_i32 : i32
    %1 = arith.extui %0 : i1 to i32
    %c0_i32_0 = arith.constant 0 : i32
    %2 = arith.cmpi ne, %1, %c0_i32_0 : i32
    scf.if %2 {
      %cst_48 = arith.constant 0.000000e+00 : f32
      %85 = vector.broadcast %cst_48 : f32 to vector<1x1x4x8x128xf32>
      %c0_49 = arith.constant 0 : index
      %c0_50 = arith.constant 0 : index
      %c0_51 = arith.constant 0 : index
      %c0_52 = arith.constant 0 : index
      %c0_53 = arith.constant 0 : index
      %86 = vector.load %arg5[%c0_49, %c0_50, %c0_51, %c0_52, %c0_53] : memref<1x1x4x8x128xf32, #tpu.memory_space<vmem>>, vector<1x1x4x8x128xf32>
      tpu.vector_store %arg5[%c0_49, %c0_50, %c0_51, %c0_52, %c0_53], %85 {strides = array<i32>} : memref<1x1x4x8x128xf32, #tpu.memory_space<vmem>>, vector<1x1x4x8x128xf32>,
    } else {
    }
    %cst = arith.constant 0.000000e+00 : f32
    %3 = vector.broadcast %cst : f32 to vector<8x128xf32>
    %c0_i32_1 = arith.constant 0 : i32
    %c32_i32 = arith.constant 32 : i32
    %4 = arith.muli %c0_i32_1, %c32_i32 : i32
    %5 = tpu.assume_multiple %4, 32 : i32
    %c0 = arith.constant 0 : index
    %6 = arith.index_cast %5 : i32 to index
    %c0_2 = arith.constant 0 : index
    %7 = vector.load %arg3[%c0, %6, %c0_2] : memref<1x32x128xf32, #tpu.memory_space<vmem>>, vector<1x32x128xf32>
    %8 = vector.shape_cast %7 : vector<1x32x128xf32> to vector<32x128xf32>
    %c0_3 = arith.constant 0 : index
    %9 = arith.index_cast %5 : i32 to index
    %c0_4 = arith.constant 0 : index
    %10 = vector.load %arg4[%c0_3, %9, %c0_4] : memref<1x32x128xi8, #tpu.memory_space<vmem>>, vector<1x32x128xi8>
    %11 = vector.shape_cast %10 : vector<1x32x128xi8> to vector<32x128xi8>
    %12 = arith.extsi %11 : vector<32x128xi8> to vector<32x128xi32>
    %c1_i32 = arith.constant 1 : i32
    %13 = vector.broadcast %c1_i32 : i32 to vector<32x128xi32>
    %14 = arith.cmpi eq, %12, %13 : vector<32x128xi32>
    %c0_i32_5 = arith.constant 0 : i32
    %15 = vector.broadcast %c0_i32_5 : i32 to vector<32x128xi32>
    %16 = arith.cmpi eq, %12, %15 : vector<32x128xi32>
    %cst_6 = arith.constant 0.000000e+00 : f32
    %17 = vector.broadcast %cst_6 : f32 to vector<32x128xf32>
    %cst_7 = arith.constant 1.000000e+00 : f32
    %18 = vector.broadcast %cst_7 : f32 to vector<32x128xf32>
    %cst_8 = arith.constant 1.000000e+00 : f32
    %19 = vector.broadcast %cst_8 : f32 to vector<32x128xf32>
    %20 = arith.subf %19, %8 : vector<32x128xf32>
    %21 = arith.select %14, %8, %20 : vector<32x128xi1>, vector<32x128xf32>
    %cst_9 = arith.constant 9.99999993E-9 : f32
    %22 = vector.broadcast %cst_9 : f32 to vector<32x128xf32>
    %23 = arith.addf %21, %22 : vector<32x128xf32>
    %24 = math.log %23 : vector<32x128xf32>
    %25 = arith.select %14, %18, %17 : vector<32x128xi1>, vector<32x128xf32>
    %26 = vector.extract_strided_slice %25 {offsets = [0, 0], sizes = [8, 128], strides = [1, 1]} : vector<32x128xf32> to vector<8x128xf32>
    %27 = vector.extract_strided_slice %25 {offsets = [8, 0], sizes = [8, 128], strides = [1, 1]} : vector<32x128xf32> to vector<8x128xf32>
    %28 = arith.addf %26, %27 : vector<8x128xf32>
    %29 = vector.extract_strided_slice %25 {offsets = [16, 0], sizes = [8, 128], strides = [1, 1]} : vector<32x128xf32> to vector<8x128xf32>
    %30 = arith.addf %28, %29 : vector<8x128xf32>
    %31 = vector.extract_strided_slice %25 {offsets = [24, 0], sizes = [8, 128], strides = [1, 1]} : vector<32x128xf32> to vector<8x128xf32>
    %32 = arith.addf %30, %31 : vector<8x128xf32>
    %33 = arith.addf %3, %32 : vector<8x128xf32>
    %34 = arith.select %16, %18, %17 : vector<32x128xi1>, vector<32x128xf32>
    %35 = vector.extract_strided_slice %34 {offsets = [0, 0], sizes = [8, 128], strides = [1, 1]} : vector<32x128xf32> to vector<8x128xf32>
    %36 = vector.extract_strided_slice %34 {offsets = [8, 0], sizes = [8, 128], strides = [1, 1]} : vector<32x128xf32> to vector<8x128xf32>
    %37 = arith.addf %35, %36 : vector<8x128xf32>
    %38 = vector.extract_strided_slice %34 {offsets = [16, 0], sizes = [8, 128], strides = [1, 1]} : vector<32x128xf32> to vector<8x128xf32>
    %39 = arith.addf %37, %38 : vector<8x128xf32>
    %40 = vector.extract_strided_slice %34 {offsets = [24, 0], sizes = [8, 128], strides = [1, 1]} : vector<32x128xf32> to vector<8x128xf32>
    %41 = arith.addf %39, %40 : vector<8x128xf32>
    %42 = arith.addf %3, %41 : vector<8x128xf32>
    %43 = arith.select %14, %24, %17 : vector<32x128xi1>, vector<32x128xf32>
    %44 = vector.extract_strided_slice %43 {offsets = [0, 0], sizes = [8, 128], strides = [1, 1]} : vector<32x128xf32> to vector<8x128xf32>
    %45 = vector.extract_strided_slice %43 {offsets = [8, 0], sizes = [8, 128], strides = [1, 1]} : vector<32x128xf32> to vector<8x128xf32>
    %46 = arith.addf %44, %45 : vector<8x128xf32>
    %47 = vector.extract_strided_slice %43 {offsets = [16, 0], sizes = [8, 128], strides = [1, 1]} : vector<32x128xf32> to vector<8x128xf32>
    %48 = arith.addf %46, %47 : vector<8x128xf32>
    %49 = vector.extract_strided_slice %43 {offsets = [24, 0], sizes = [8, 128], strides = [1, 1]} : vector<32x128xf32> to vector<8x128xf32>
    %50 = arith.addf %48, %49 : vector<8x128xf32>
    %51 = arith.addf %3, %50 : vector<8x128xf32>
    %52 = arith.select %16, %24, %17 : vector<32x128xi1>, vector<32x128xf32>
    %53 = vector.extract_strided_slice %52 {offsets = [0, 0], sizes = [8, 128], strides = [1, 1]} : vector<32x128xf32> to vector<8x128xf32>
    %54 = vector.extract_strided_slice %52 {offsets = [8, 0], sizes = [8, 128], strides = [1, 1]} : vector<32x128xf32> to vector<8x128xf32>
    %55 = arith.addf %53, %54 : vector<8x128xf32>
    %56 = vector.extract_strided_slice %52 {offsets = [16, 0], sizes = [8, 128], strides = [1, 1]} : vector<32x128xf32> to vector<8x128xf32>
    %57 = arith.addf %55, %56 : vector<8x128xf32>
    %58 = vector.extract_strided_slice %52 {offsets = [24, 0], sizes = [8, 128], strides = [1, 1]} : vector<32x128xf32> to vector<8x128xf32>
    %59 = arith.addf %57, %58 : vector<8x128xf32>
    %60 = arith.addf %3, %59 : vector<8x128xf32>
    %c1_i32_10 = arith.constant 1 : i32
    %c0_11 = arith.constant 0 : index
    %c0_12 = arith.constant 0 : index
    %c0_13 = arith.constant 0 : index
    %c0_14 = arith.constant 0 : index
    %c0_15 = arith.constant 0 : index
    %61 = vector.load %arg5[%c0_11, %c0_12, %c0_13, %c0_14, %c0_15] : memref<1x1x4x8x128xf32, #tpu.memory_space<vmem>>, vector<1x1x1x8x128xf32>
    %62 = vector.shape_cast %61 : vector<1x1x1x8x128xf32> to vector<8x128xf32>
    %63 = arith.addf %62, %33 : vector<8x128xf32>
    %c0_16 = arith.constant 0 : index
    %c0_17 = arith.constant 0 : index
    %c0_18 = arith.constant 0 : index
    %c0_19 = arith.constant 0 : index
    %c0_20 = arith.constant 0 : index
    %64 = vector.load %arg5[%c0_16, %c0_17, %c0_18, %c0_19, %c0_20] : memref<1x1x4x8x128xf32, #tpu.memory_space<vmem>>, vector<1x1x1x8x128xf32>
    %65 = vector.shape_cast %64 : vector<1x1x1x8x128xf32> to vector<8x128xf32>
    %66 = vector.shape_cast %63 : vector<8x128xf32> to vector<1x1x1x8x128xf32>
    tpu.vector_store %arg5[%c0_16, %c0_17, %c0_18, %c0_19, %c0_20], %66 {strides = array<i32>} : memref<1x1x4x8x128xf32, #tpu.memory_space<vmem>>, vector<1x1x1x8x128xf32>,
    %c0_21 = arith.constant 0 : index
    %c0_22 = arith.constant 0 : index
    %c1 = arith.constant 1 : index
    %c0_23 = arith.constant 0 : index
    %c0_24 = arith.constant 0 : index
    %67 = vector.load %arg5[%c0_21, %c0_22, %c1, %c0_23, %c0_24] : memref<1x1x4x8x128xf32, #tpu.memory_space<vmem>>, vector<1x1x1x8x128xf32>
    %68 = vector.shape_cast %67 : vector<1x1x1x8x128xf32> to vector<8x128xf32>
    %69 = arith.addf %68, %42 : vector<8x128xf32>
    %c0_25 = arith.constant 0 : index
    %c0_26 = arith.constant 0 : index
    %c1_27 = arith.constant 1 : index
    %c0_28 = arith.constant 0 : index
    %c0_29 = arith.constant 0 : index
    %70 = vector.load %arg5[%c0_25, %c0_26, %c1_27, %c0_28, %c0_29] : memref<1x1x4x8x128xf32, #tpu.memory_space<vmem>>, vector<1x1x1x8x128xf32>
    %71 = vector.shape_cast %70 : vector<1x1x1x8x128xf32> to vector<8x128xf32>
    %72 = vector.shape_cast %69 : vector<8x128xf32> to vector<1x1x1x8x128xf32>
    tpu.vector_store %arg5[%c0_25, %c0_26, %c1_27, %c0_28, %c0_29], %72 {strides = array<i32>} : memref<1x1x4x8x128xf32, #tpu.memory_space<vmem>>, vector<1x1x1x8x128xf32>,
    %c0_30 = arith.constant 0 : index
    %c0_31 = arith.constant 0 : index
    %c2 = arith.constant 2 : index
    %c0_32 = arith.constant 0 : index
    %c0_33 = arith.constant 0 : index
    %73 = vector.load %arg5[%c0_30, %c0_31, %c2, %c0_32, %c0_33] : memref<1x1x4x8x128xf32, #tpu.memory_space<vmem>>, vector<1x1x1x8x128xf32>
    %74 = vector.shape_cast %73 : vector<1x1x1x8x128xf32> to vector<8x128xf32>
    %75 = arith.addf %74, %51 : vector<8x128xf32>
    %c0_34 = arith.constant 0 : index
    %c0_35 = arith.constant 0 : index
    %c2_36 = arith.constant 2 : index
    %c0_37 = arith.constant 0 : index
    %c0_38 = arith.constant 0 : index
    %76 = vector.load %arg5[%c0_34, %c0_35, %c2_36, %c0_37, %c0_38] : memref<1x1x4x8x128xf32, #tpu.memory_space<vmem>>, vector<1x1x1x8x128xf32>
    %77 = vector.shape_cast %76 : vector<1x1x1x8x128xf32> to vector<8x128xf32>
    %78 = vector.shape_cast %75 : vector<8x128xf32> to vector<1x1x1x8x128xf32>
    tpu.vector_store %arg5[%c0_34, %c0_35, %c2_36, %c0_37, %c0_38], %78 {strides = array<i32>} : memref<1x1x4x8x128xf32, #tpu.memory_space<vmem>>, vector<1x1x1x8x128xf32>,
    %c0_39 = arith.constant 0 : index
    %c0_40 = arith.constant 0 : index
    %c3 = arith.constant 3 : index
    %c0_41 = arith.constant 0 : index
    %c0_42 = arith.constant 0 : index
    %79 = vector.load %arg5[%c0_39, %c0_40, %c3, %c0_41, %c0_42] : memref<1x1x4x8x128xf32, #tpu.memory_space<vmem>>, vector<1x1x1x8x128xf32>
    %80 = vector.shape_cast %79 : vector<1x1x1x8x128xf32> to vector<8x128xf32>
    %81 = arith.addf %80, %60 : vector<8x128xf32>
    %c0_43 = arith.constant 0 : index
    %c0_44 = arith.constant 0 : index
    %c3_45 = arith.constant 3 : index
    %c0_46 = arith.constant 0 : index
    %c0_47 = arith.constant 0 : index
    %82 = vector.load %arg5[%c0_43, %c0_44, %c3_45, %c0_46, %c0_47] : memref<1x1x4x8x128xf32, #tpu.memory_space<vmem>>, vector<1x1x1x8x128xf32>
    %83 = vector.shape_cast %82 : vector<1x1x1x8x128xf32> to vector<8x128xf32>
    %84 = vector.shape_cast %81 : vector<8x128xf32> to vector<1x1x1x8x128xf32>
    tpu.vector_store %arg5[%c0_43, %c0_44, %c3_45, %c0_46, %c0_47], %84 {strides = array<i32>} : memref<1x1x4x8x128xf32, #tpu.memory_space<vmem>>, vector<1x1x1x8x128xf32>,
    return
  }
  func.func @transform_0(%arg0: i32, %arg1: i32, %arg2: i32) -> (i32, i32, i32) {
    %c1_i32 = arith.constant 1 : i32
    %0 = arith.muli %arg0, %c1_i32 : i32
    %1 = arith.addi %0, %arg2 : i32
    %c0_i32 = arith.constant 0 : i32
    %c0_i32_0 = arith.constant 0 : i32
    return %arg1, %1, %c0_i32 : i32, i32, i32
  }
  func.func @transform_1(%arg0: i32, %arg1: i32, %arg2: i32) -> (i32, i32, i32) {
    %c1_i32 = arith.constant 1 : i32
    %0 = arith.muli %arg0, %c1_i32 : i32
    %1 = arith.addi %0, %arg2 : i32
    %c0_i32 = arith.constant 0 : i32
    %c0_i32_0 = arith.constant 0 : i32
    return %arg1, %1, %c0_i32 : i32, i32, i32
  }
  func.func @transform_2(%arg0: i32, %arg1: i32, %arg2: i32) -> (i32, i32, i32, i32, i32) {
    %c0_i32 = arith.constant 0 : i32
    %c0_i32_0 = arith.constant 0 : i32
    %c0_i32_1 = arith.constant 0 : i32
    %c0_i32_2 = arith.constant 0 : i32
    return %arg0, %arg1, %c0_i32, %c0_i32_0, %c0_i32_1 : i32, i32, i32, i32, i32
  }
}

</mosaic_0001>

<llo_original>
// kernel: msce_loss.1
$region0: #{msce_loss.1}
  #allocation0 [shape = 'u32[]', space=smem, size = 0x4, offset = 0x4, fixed_abs, tag = 'smem constant byte address 0x4 - core index']
  #allocation1 [shape = 'u32[72,128]{1,0:T(1,128)}', space=vmem, size = 0x9000, scoped, tag = 'internal scratch']
  %s0 = inlined_call_operand.vmem [shape: f32[2,32,128], index: 0, kind: input, shape index: {}]
  %s1 = inlined_call_operand.vmem [shape: s8[2,32,128], index: 1, kind: input, shape index: {}]
  %s2 = inlined_call_operand.vmem [shape: f32[1,2,4,8,128], index: 2, kind: output, shape index: {}]
  %s3 = sld [smem:[#allocation0]]
  $region45: #{msce_loss.1} parent=0
    _
  %s5 = ssub.s32 1, %s3
  %s6 = scalar_select 0, %s5, %s3
  loop: start=0, step=1, limit=4
  $region2: #{msce_loss.1} parent=0 // loop_pre_header
    _
  $region3: #{msce_loss.1} parent=0 // loop_header
    %s8 = sphi 0, %s12
    %p9 = scmp.ge.s32.totalorder %s8, 4
    %s15 = sphi 0, %s34
    %s16 = sphi 0, %s30
    %s17 = sphi 0, %s26
    %s18 = sphi 0, %s15
    %s19 = sphi 0, %s16
    %s20 = sphi 0, %s17
    %s21 = sphi 0, %s18
    %s22 = sphi 0, %s19
    %s23 = sphi 0, %s20
    %s41 = sphi 0, %s43
    %s44 = sphi 0, %s41
    %s45 = sphi 0, %s44
    %s61 = sphi 0, %s45
    %s71 = sphi 0, %s73
    %s74 = sphi 0, %s71
    %s75 = sphi 0, %s74
    %s91 = sphi 0, %s75
    %s99 = sphi 0, %s101
    %s102 = sphi 0, %s99
    %s103 = sphi 0, %s102
    %s119 = sphi 0, %s103
  $region4: #{msce_loss.1} parent=0 // loop_header_branch
    %11 = sbr.rel (%p9) target = $region8
  $region5: #{msce_loss.1} parent=0 // loop_body
    %s13 = ssub.s32 %s8, 1
    %s14 = ssub.s32 %s8, 2
    %s24 = sadd.s32 1, %s17
    %p25 = scmp.ge.s32.totalorder %s24, 1
    %s26 = scalar_select %p25, 0, %s24
    %s27 = sadd.s32 1, %s16
    %s28 = scalar_select %p25, %s27, %s16
    %p29 = scmp.ge.s32.totalorder %s28, 2
    %s30 = scalar_select %p29, 0, %s28
    %s31 = sadd.s32 1, %s15
    %s32 = scalar_select %p29, %s31, %s15
    %p33 = scmp.ge.s32.totalorder %s32, 1
    %s34 = scalar_select %p33, 0, %s32
    %s35 = sadd.s32 %s15, %s17
    %s36 = sadd.s32 %s34, %s26
    %s37 = ssub.s32 %s16, %s30
    %s38 = ssub.s32 %s35, %s36
    %s39 = sor.u32 %s37, %s38
    %p40 = scmp.eq.s32.totalorder %s39, 0
    %s42 = sadd.s32 %s41, 1
    %s43 = scalar_select %p40, %s41, %s42
    %p46 = pneg %p40
    %p47 = scmp.eq.s32.totalorder %s8, 1
    %p48 = por %p46, %p47
    %p49 = scmp.ne.s32.totalorder %s41, %s44
    %p50 = scmp.eq.s32.totalorder %s8, 0
    %p51 = por %p49, %p50
    %p52 = scmp.ne.s32.totalorder %s41, %s44
    %p53 = scmp.eq.s32.totalorder %s13, 1
    %p54 = por %p52, %p53
    %p55 = scmp.ne.s32.totalorder %s44, %s45
    %p56 = scmp.eq.s32.totalorder %s13, 0
    %p57 = por %p55, %p56
    %p58 = scmp.ne.s32.totalorder %s44, %s45
    %p59 = scmp.eq.s32.totalorder %s14, 1
    %p60 = por %p58, %p59
    %p62 = scmp.ne.s32.totalorder %s45, %s61
    %p63 = scmp.eq.s32.totalorder %s14, 0
    %p64 = por %p62, %p63
    %s65 = sadd.s32 %s15, %s17
    %s66 = sadd.s32 %s34, %s26
    %s67 = ssub.s32 %s16, %s30
    %s68 = ssub.s32 %s65, %s66
    %s69 = sor.u32 %s67, %s68
    %p70 = scmp.eq.s32.totalorder %s69, 0
    %s72 = sadd.s32 %s71, 1
    %s73 = scalar_select %p70, %s71, %s72
    %p76 = pneg %p70
    %p77 = scmp.eq.s32.totalorder %s8, 1
    %p78 = por %p76, %p77
    %p79 = scmp.ne.s32.totalorder %s71, %s74
    %p80 = scmp.eq.s32.totalorder %s8, 0
    %p81 = por %p79, %p80
    %p82 = scmp.ne.s32.totalorder %s71, %s74
    %p83 = scmp.eq.s32.totalorder %s13, 1
    %p84 = por %p82, %p83
    %p85 = scmp.ne.s32.totalorder %s74, %s75
    %p86 = scmp.eq.s32.totalorder %s13, 0
    %p87 = por %p85, %p86
    %p88 = scmp.ne.s32.totalorder %s74, %s75
    %p89 = scmp.eq.s32.totalorder %s14, 1
    %p90 = por %p88, %p89
    %p92 = scmp.ne.s32.totalorder %s75, %s91
    %p93 = scmp.eq.s32.totalorder %s14, 0
    %p94 = por %p92, %p93
    %s95 = ssub.s32 %s15, %s34
    %s96 = ssub.s32 %s16, %s30
    %s97 = sor.u32 %s95, %s96
    %p98 = scmp.eq.s32.totalorder %s97, 0
    %s100 = sadd.s32 %s99, 1
    %s101 = scalar_select %p98, %s99, %s100
    %p104 = pneg %p98
    %p105 = scmp.eq.s32.totalorder %s8, 1
    %p106 = por %p104, %p105
    %p107 = scmp.ne.s32.totalorder %s99, %s102
    %p108 = scmp.eq.s32.totalorder %s8, 0
    %p109 = por %p107, %p108
    %p110 = scmp.ne.s32.totalorder %s99, %s102
    %p111 = scmp.eq.s32.totalorder %s13, 1
    %p112 = por %p110, %p111
    %p113 = scmp.ne.s32.totalorder %s102, %s103
    %p114 = scmp.eq.s32.totalorder %s13, 0
    %p115 = por %p113, %p114
    %p116 = scmp.ne.s32.totalorder %s102, %s103
    %p117 = scmp.eq.s32.totalorder %s14, 1
    %p118 = por %p116, %p117
    %p120 = scmp.ne.s32.totalorder %s103, %s119
    %p121 = scmp.eq.s32.totalorder %s14, 0
    %p122 = por %p120, %p121
    %p123 = scmp.le.s32.totalorder 1, %s8
    %p124 = scmp.lt.s32.totalorder %s8, 3
    %p125 = pnand %p123, %p124
    %p126 = pneg %p125
    // Predicated region
    $region9: #{msce_loss.1} parent=5 // pred_check
      _
    $region10: #{msce_loss.1} parent=5 // pred_check_branch
      %128 = sbr.rel (%p125) target = $region12
    $region11: #{msce_loss.1} parent=5 // pred_region
      %s129 = ssub.s32 %s8, 1
    $region12: #{msce_loss.1} parent=5 // pred_fallthru
      _
    %p130 = scmp.lt.s32.totalorder %s8, 2
    // Predicated region
    $region13: #{msce_loss.1} parent=5 // pred_check
      %p131 = pneg %p130
    $region14: #{msce_loss.1} parent=5 // pred_check_branch
      %133 = sbr.rel (%p131) target = $region16
    $region15: #{msce_loss.1} parent=5 // pred_region
      // Predicated region
      $region17: #{msce_loss.1} parent=15 // pred_check
        %p134 = pneg %p51
      $region18: #{msce_loss.1} parent=15 // pred_check_branch
        %136 = sbr.rel (%p134) target = $region20
      $region19: #{msce_loss.1} parent=15 // pred_region
        %s137 = sadd.s32 %s15, %s17
        %s138 = smul.u32 4, %s137
        %p139 = scmp.lt.s32.totalorder %s16, 1
        %s140 = scalar_select %p139, %s16, 1
        %p141 = scmp.lt.s32.totalorder %s138, 3
        %s142 = scalar_select %p141, %s138, 3
        %s143 = smul.addr %s140, 4
        %s144 = sadd.s32 %s142, %s143
        %s145 = smul.addr %s144, 8
        %s146 = scalar_lea.vmem %s0, %s145
        %s147 = sadd.s32 %s15, %s17
        %s148 = smul.u32 4, %s147
      $region20: #{msce_loss.1} parent=15 // pred_fallthru
        _
      // Predicated region
      $region21: #{msce_loss.1} parent=15 // pred_check
        %p149 = pneg %p81
      $region22: #{msce_loss.1} parent=15 // pred_check_branch
        %151 = sbr.rel (%p149) target = $region24
      $region23: #{msce_loss.1} parent=15 // pred_region
        %s152 = sadd.s32 %s15, %s17
        %p153 = scmp.lt.s32.totalorder %s16, 1
        %s154 = scalar_select %p153, %s16, 1
        %p155 = scmp.lt.s32.totalorder %s152, 0
        %s156 = scalar_select %p155, %s152, 0
        %s157 = sadd.s32 %s156, %s154
        %s158 = smul.addr %s157, 8
        %s159 = scalar_lea.vmem %s1, %s158
        %s160 = sadd.s32 %s15, %s17
      $region24: #{msce_loss.1} parent=15 // pred_fallthru
        _
    $region16: #{msce_loss.1} parent=5 // pred_fallthru
      _
    %p161 = scmp.le.s32.totalorder 1, %s8
    %p162 = scmp.lt.s32.totalorder %s8, 3
    %p163 = pnand %p161, %p162
    %p164 = pneg %p163
    // Predicated region
    $region25: #{msce_loss.1} parent=5 // pred_check
      _
    $region26: #{msce_loss.1} parent=5 // pred_check_branch
      %166 = sbr.rel (%p163) target = $region28
    $region27: #{msce_loss.1} parent=5 // pred_region
      %s167 = ssub.s32 %s8, 1
      %s168 = sadd.s32 %s18, %s20
      %s169 = smul.u32 4, %s168
      %p170 = scmp.lt.s32.totalorder %s19, 1
      %s171 = scalar_select %p170, %s19, 1
      %p172 = scmp.lt.s32.totalorder %s169, 3
      %s173 = scalar_select %p172, %s169, 3
      %s174 = smul.addr %s171, 4
      %s175 = sadd.s32 %s173, %s174
      %s176 = smul.addr %s175, 8
      %s177 = scalar_lea.vmem %s0, %s176
      %p178 = pneg %p57
      %p179 = pneg %p54
      %s180 = sadd.s32 %s18, %s20
      %p181 = scmp.lt.s32.totalorder %s19, 1
      %s182 = scalar_select %p181, %s19, 1
      %p183 = scmp.lt.s32.totalorder %s180, 0
      %s184 = scalar_select %p183, %s180, 0
      %s185 = sadd.s32 %s184, %s182
      %s186 = smul.addr %s185, 8
      %s187 = scalar_lea.vmem %s1, %s186
      %p188 = pneg %p87
      %p189 = pneg %p84
      %p190 = pneg %p115
      %p191 = pneg %p112
      %p192 = scmp.lt.s32.totalorder %s18, 0
      %s193 = scalar_select %p192, %s18, 0
      %p194 = scmp.lt.s32.totalorder %s19, 1
      %s195 = scalar_select %p194, %s19, 1
      %s196 = smul.addr %s195, 4
      %s197 = smul.addr %s193, 8
      %s198 = sadd.s32 %s196, %s197
      %s199 = smul.addr %s198, 8
      %s200 = scalar_lea.vmem %s2, %s199
      %s201 = sadd.s32 %s18, %s20
      %s202 = smul.u32 4, %s201
      %p203 = scmp.lt.s32.totalorder %s19, 1
      %s204 = scalar_select %p203, %s19, 1
      %p205 = scmp.lt.s32.totalorder %s202, 3
      %s206 = scalar_select %p205, %s202, 3
      %s207 = smul.addr %s204, 4
      %s208 = sadd.s32 %s206, %s207
      %s209 = smul.addr %s208, 8
      %s210 = scalar_lea.vmem %s0, %s209
      %s211 = sadd.s32 %s18, %s20
      %s212 = smul.u32 4, %s211
      %s213 = sadd.s32 %s18, %s20
      %p214 = scmp.lt.s32.totalorder %s19, 1
      %s215 = scalar_select %p214, %s19, 1
      %p216 = scmp.lt.s32.totalorder %s213, 0
      %s217 = scalar_select %p216, %s213, 0
      %s218 = sadd.s32 %s217, %s215
      %s219 = smul.addr %s218, 8
      %s220 = scalar_lea.vmem %s1, %s219
      %s221 = sadd.s32 %s18, %s20
      %p222 = scmp.lt.s32.totalorder %s18, 0
      %s223 = scalar_select %p222, %s18, 0
      %p224 = scmp.lt.s32.totalorder %s19, 1
      %s225 = scalar_select %p224, %s19, 1
      %s226 = smul.addr %s225, 4
      %s227 = smul.addr %s223, 8
      %s228 = sadd.s32 %s226, %s227
      %s229 = smul.addr %s228, 8
      %s230 = scalar_lea.vmem %s2, %s229
      %p231 = scmp.eq.s32.totalorder %s20, 0
      // Predicated region
      $region29: #{msce_loss.1} parent=27 // pred_check
        %p232 = pneg %p231
      $region30: #{msce_loss.1} parent=27 // pred_check_branch
        %234 = sbr.rel (%p232) target = $region32
      $region31: #{msce_loss.1} parent=27 // pred_region
        %235 = vst [vmem:[%s230] sm:$0xff] 0.0
        %236 = vst [vmem:[%s230 + $0x8] sm:$0xff] 0.0
        %237 = vst [vmem:[%s230 + $0x10] sm:$0xff] 0.0
        %238 = vst [vmem:[%s230 + $0x18] sm:$0xff] 0.0
      $region32: #{msce_loss.1} parent=27 // pred_fallthru
        _
      %v239 = vld [vmem:[%s210] sm:$0xff]
      %v240 = vld [vmem:[%s210 + $0x8] sm:$0xff]
      %v241 = vld [vmem:[%s210 + $0x10] sm:$0xff]
      %v242 = vld [vmem:[%s210 + $0x18] sm:$0xff]
      %v243 = vld [vmem:[%s220] sm:$0xff]
      %v244 = vunpack.c.0.s8 %v243
      %v245 = vunpack.c.1.s8 %v243
      %v246 = vunpack.c.2.s8 %v243
      %v247 = vunpack.c.3.s8 %v243
      %vm248 = vcmp.eq.s32.totalorder %v244, 1
      %vm249 = vcmp.eq.s32.totalorder %v245, 1
      %vm250 = vcmp.eq.s32.totalorder %v246, 1
      %vm251 = vcmp.eq.s32.totalorder %v247, 1
      %vm252 = vcmp.eq.s32.totalorder %v244, 0
      %vm253 = vcmp.eq.s32.totalorder %v245, 0
      %vm254 = vcmp.eq.s32.totalorder %v246, 0
      %vm255 = vcmp.eq.s32.totalorder %v247, 0
      %v256 = vsub.f32 1.0, %v239
      %v257 = vsub.f32 1.0, %v240
      %v258 = vsub.f32 1.0, %v241
      %v259 = vsub.f32 1.0, %v242
      %v260 = vsel %vm248, %v239, %v256
      %v261 = vsel %vm249, %v240, %v257
      %v262 = vsel %vm250, %v241, %v258
      %v263 = vsel %vm251, %v242, %v259
      %v264 = vadd.f32 %v260, 1e-08
      %v265 = vadd.f32 %v261, 1e-08
      %v266 = vadd.f32 %v262, 1e-08
      %v267 = vadd.f32 %v263, 1e-08
      %v268 = vlog2.pop %v264
      %v269 = vmul.f32 %v268, 0.6931472
      %v270 = vlog2.pop %v265
      %v271 = vmul.f32 %v270, 0.6931472
      %v272 = vlog2.pop %v266
      %v273 = vmul.f32 %v272, 0.6931472
      %v274 = vlog2.pop %v267
      %v275 = vmul.f32 %v274, 0.6931472
      %v276 = vsel %vm248, 1.0, 0.0
      %v277 = vsel %vm249, 1.0, 0.0
      %v278 = vsel %vm250, 1.0, 0.0
      %v279 = vsel %vm251, 1.0, 0.0
      %v280 = vadd.f32 %v276, %v277
      %v281 = vadd.f32 %v280, %v278
      %v282 = vadd.f32 %v281, %v279
      %v283 = vadd.f32 %v282, 0.0
      %v284 = vsel %vm252, 1.0, 0.0
      %v285 = vsel %vm253, 1.0, 0.0
      %v286 = vsel %vm254, 1.0, 0.0
      %v287 = vsel %vm255, 1.0, 0.0
      %v288 = vadd.f32 %v284, %v285
      %v289 = vadd.f32 %v288, %v286
      %v290 = vadd.f32 %v289, %v287
      %v291 = vadd.f32 %v290, 0.0
      %v292 = vsel %vm248, %v269, 0.0
      %v293 = vsel %vm249, %v271, 0.0
      %v294 = vsel %vm250, %v273, 0.0
      %v295 = vsel %vm251, %v275, 0.0
      %v296 = vadd.f32 %v292, %v293
      %v297 = vadd.f32 %v296, %v294
      %v298 = vadd.f32 %v297, %v295
      %v299 = vadd.f32 %v298, 0.0
      %v300 = vsel %vm252, %v269, 0.0
      %v301 = vsel %vm253, %v271, 0.0
      %v302 = vsel %vm254, %v273, 0.0
      %v303 = vsel %vm255, %v275, 0.0
      %v304 = vadd.f32 %v300, %v301
      %v305 = vadd.f32 %v304, %v302
      %v306 = vadd.f32 %v305, %v303
      %v307 = vadd.f32 %v306, 0.0
      %v308 = vld [vmem:[%s230] sm:$0xff]
      %v309 = vadd.f32 %v308, %v283
      %310 = vst [vmem:[%s230] sm:$0xff] %v309
      %s311 = scalar_lea.vmem %s230, 8
      %v312 = vld [vmem:[%s311] sm:$0xff]
      %v313 = vadd.f32 %v312, %v291
      %314 = vst [vmem:[%s311] sm:$0xff] %v313
      %s315 = scalar_lea.vmem %s230, 16
      %v316 = vld [vmem:[%s315] sm:$0xff]
      %v317 = vadd.f32 %v316, %v299
      %318 = vst [vmem:[%s315] sm:$0xff] %v317
      %s319 = scalar_lea.vmem %s230, 24
      %v320 = vld [vmem:[%s319] sm:$0xff]
      %v321 = vadd.f32 %v320, %v307
      %322 = vst [vmem:[%s319] sm:$0xff] %v321
      %p323 = scmp.lt.s32.totalorder %s18, 0
      %s324 = scalar_select %p323, %s18, 0
      %p325 = scmp.lt.s32.totalorder %s19, 1
      %s326 = scalar_select %p325, %s19, 1
      %s327 = smul.addr %s326, 4
      %s328 = smul.addr %s324, 8
      %s329 = sadd.s32 %s327, %s328
      %s330 = smul.addr %s329, 8
      %s331 = scalar_lea.vmem %s2, %s330
      // Predicated region
      $region33: #{msce_loss.1} parent=27 // pred_check
        %p332 = pneg %p112
      $region34: #{msce_loss.1} parent=27 // pred_check_branch
        %334 = sbr.rel (%p332) target = $region36
      $region35: #{msce_loss.1} parent=27 // pred_region
        _
      $region36: #{msce_loss.1} parent=27 // pred_fallthru
        _
    $region28: #{msce_loss.1} parent=5 // pred_fallthru
      _
    %p335 = scmp.le.s32.totalorder 2, %s8
    // Predicated region
    $region37: #{msce_loss.1} parent=5 // pred_check
      %p336 = pneg %p335
    $region38: #{msce_loss.1} parent=5 // pred_check_branch
      %338 = sbr.rel (%p336) target = $region40
    $region39: #{msce_loss.1} parent=5 // pred_region
      %s339 = ssub.s32 %s8, 2
      // Predicated region
      $region41: #{msce_loss.1} parent=39 // pred_check
        %p340 = pneg %p118
      $region42: #{msce_loss.1} parent=39 // pred_check_branch
        %342 = sbr.rel (%p340) target = $region44
      $region43: #{msce_loss.1} parent=39 // pred_region
        %p343 = scmp.lt.s32.totalorder %s21, 0
        %s344 = scalar_select %p343, %s21, 0
        %p345 = scmp.lt.s32.totalorder %s22, 1
        %s346 = scalar_select %p345, %s22, 1
        %s347 = smul.addr %s346, 4
        %s348 = smul.addr %s344, 8
        %s349 = sadd.s32 %s347, %s348
        %s350 = smul.addr %s349, 8
        %s351 = scalar_lea.vmem %s2, %s350
      $region44: #{msce_loss.1} parent=39 // pred_fallthru
        _
    $region40: #{msce_loss.1} parent=5 // pred_fallthru
      _
  $region6: #{msce_loss.1} parent=0 // loop_footer
    %s12 = sadd.s32 1, %s8
  $region7: #{msce_loss.1} parent=0 // loop_footer_branch
    %7 = sbr.rel target = $region3
  $region8: #{msce_loss.1} parent=0 // loop_exit
    _

</llo_original>
